<compile_context>
chip_gen: v7x
topology: tpu7x:2x2x1
jax: 0.10.0
libtpu: 0.0.40
codegen_flags: <defaults>
</compile_context>

<pallas_src>
import jax
import jax.numpy as jnp
from jax.experimental import pallas as pl
from jax.experimental.pallas import tpu as pltpu


def _round_up(x, m):
    return (x + m - 1) // m * m


def _vmem_budget_bytes():
    """Per-generation VMEM budget for resident tiles (v7x: 64 MiB, v5e/v6e: 128 MiB)."""
    try:
        phys = int(pltpu.get_tpu_info().vmem_capacity_bytes)
    except Exception:
        phys = 64 << 20          # conservative fallback = smallest (v7x-sized) part
    return int(min(phys - (16 << 20), 96 << 20))


def _layernorm_f32(x, gamma, beta, eps=1e-6):
    """Annotated-transformer LayerNorm: unbiased std, eps added to the std (f32 VPU math)."""
    D = x.shape[-1]
    mean = jnp.mean(x, axis=-1, keepdims=True)
    diff = x - mean
    var_unbiased = jnp.sum(diff * diff, axis=-1, keepdims=True) * (1.0 / (D - 1))
    inv = pl.reciprocal(jnp.sqrt(var_unbiased) + eps, approx=True)   # EUP slot, ~free
    return diff * inv * gamma + beta


# ---------------------------------------------------------------------------
# Fused path: all three SublayerConnections in one kernel (weights resident).
# ---------------------------------------------------------------------------
def _decoder_layer_fused_kernel(x_ref,
                                g0_ref, be0_ref, w0_ref, b0_ref,
                                g1_ref, be1_ref, w1_ref, b1_ref,
                                g2_ref, be2_ref, w2_ref, b2_ref,
                                o_ref):
    x = x_ref[...].astype(jnp.float32)
    for g_ref, be_ref, w_ref, b_ref in ((g0_ref, be0_ref, w0_ref, b0_ref),
                                        (g1_ref, be1_ref, w1_ref, b1_ref),
                                        (g2_ref, be2_ref, w2_ref, b2_ref)):
        normed = _layernorm_f32(x, g_ref[...], be_ref[...])
        y = jnp.dot(normed.astype(w_ref.dtype), w_ref[...],
                    preferred_element_type=jnp.float32)              # bf16 MXU, f32 acc
        x = x + y + b_ref[...].astype(jnp.float32)                   # dropout = identity (eval)
    o_ref[...] = x.astype(o_ref.dtype)


def _fused_vmem_needed(tm, size, itemsize):
    return (2 * tm * size * itemsize        # double-buffered x row block
            + 2 * tm * size * itemsize      # double-buffered output row block
            + 2 * 3 * size * size * 2       # three resident bf16 weights (2 bufs each)
            + 4 * tm * size * 4             # f32 LN / residual intermediates
            + 4 * 3 * size * 4)             # gamma / beta / bias


def _decoder_layer_fused(x, params, *, tm_eff):
    batch, seq, size = x.shape
    N = batch * seq
    x2 = x.reshape(N, size)
    itemsize = x.dtype.itemsize

    flat_args = [x2]
    in_specs = [pl.BlockSpec((tm_eff, size), lambda i: (i, 0))]
    for (gamma, beta, w, b) in params:
        flat_args += [gamma.reshape(1, size).astype(jnp.float32),
                      beta.reshape(1, size).astype(jnp.float32),
                      w.astype(jnp.bfloat16),                         # native MXU dtype
                      b.reshape(1, size).astype(jnp.float32)]
        in_specs += [pl.BlockSpec((1, size), lambda i: (0, 0)),       # gamma (a_2)
                     pl.BlockSpec((1, size), lambda i: (0, 0)),       # beta  (b_2)
                     pl.BlockSpec((size, size), lambda i: (0, 0)),    # resident bf16 weight
                     pl.BlockSpec((1, size), lambda i: (0, 0))]       # bias

    needed = _fused_vmem_needed(tm_eff, size, itemsize)
    vmem_limit = int(min(max(needed + (8 << 20), 32 << 20), _vmem_budget_bytes()))

    cost = pl.CostEstimate(
        flops=3 * 2 * N * size * size + 30 * N * size,
        transcendentals=6 * N,
        bytes_accessed=2 * N * size * itemsize + 3 * size * size * 2 + 9 * size * 4)

    out = pl.pallas_call(
        _decoder_layer_fused_kernel,
        out_shape=jax.ShapeDtypeStruct((N, size), x.dtype),
        grid_spec=pltpu.PrefetchScalarGridSpec(
            num_scalar_prefetch=0,
            grid=(pl.cdiv(N, tm_eff),),
            in_specs=in_specs,
            out_specs=pl.BlockSpec((tm_eff, size), lambda i: (i, 0)),
        ),
        compiler_params=pltpu.CompilerParams(
            dimension_semantics=("parallel",),       # row blocks shard across v7x's 2 TCs
            vmem_limit_bytes=vmem_limit,
        ),
        cost_estimate=cost,
    )(*flat_args)
    return out.reshape(batch, seq, size)


# ---------------------------------------------------------------------------
# Per-sublayer fallback: resident weight when possible, else column-tiled with
# the LayerNorm cached across column tiles in a VMEM scratch.
# ---------------------------------------------------------------------------
def _sublayer_connection_kernel(x_ref, gamma_ref, beta_ref, w_ref, b_ref, o_ref, ln_ref):
    j = pl.program_id(1)
    tn = o_ref.shape[-1]

    # LayerNorm computed once per row block, cached (bf16) for every column tile j.
    @pl.when(j == 0)
    def _():
        x = x_ref[...].astype(jnp.float32)
        ln_ref[...] = _layernorm_f32(x, gamma_ref[...], beta_ref[...]).astype(ln_ref.dtype)

    y = jnp.dot(ln_ref[...], w_ref[...], preferred_element_type=jnp.float32)
    y = y + b_ref[...].astype(jnp.float32)

    col0 = pl.multiple_of(j * tn, tn)
    x_res = x_ref[:, pl.ds(col0, tn)].astype(jnp.float32)
    o_ref[...] = (x_res + y).astype(o_ref.dtype)                      # dropout = identity (eval)


def _sublayer_vmem_needed(tm, tn, size, itemsize):
    return (2 * tm * size * itemsize        # x row block (double-buffered)
            + 2 * tm * tn * itemsize        # output block
            + 2 * size * tn * 2             # bf16 weight block
            + tm * size * 2                 # LN scratch (bf16)
            + 4 * tm * size * 4             # f32 LN / matmul intermediates
            + 4 * 3 * size * 4)             # gamma / beta / bias


def sublayer_connection(x, gamma, beta, w, b, *, budget=None):
    """x + Linear(LayerNorm(x)) with dropout in eval mode.  x: (batch, seq, size)."""
    batch, seq, size = x.shape
    N = batch * seq
    x2 = x.reshape(N, size)
    itemsize = x.dtype.itemsize
    if budget is None:
        budget = _vmem_budget_bytes()

    def shrink_tm(tn):
        tm = min(256, _round_up(N, 8))
        while tm > 8 and _sublayer_vmem_needed(tm, tn, size, itemsize) > budget:
            tm = max(_round_up(tm // 2, 8), 8)
        return tm

    # Prefer the full bf16 weight resident across the whole grid (no re-streaming).
    tn_eff = size
    tm_eff = shrink_tm(tn_eff)
    if _sublayer_vmem_needed(tm_eff, tn_eff, size, itemsize) > budget:
        # Weight too large to keep resident: column-tile it (lane-aligned tile).
        for cand in (1024, 512, 256, 128):
            if size % cand == 0 and size > cand:
                tn_eff = cand
                break
        tm_eff = shrink_tm(tn_eff)
    # TODO(synk): if even the smallest tile plan exceeds the budget (huge `size`),
    # a K-tiled accumulation grid would be needed.

    n_row = pl.cdiv(N, tm_eff)
    n_col = size // tn_eff
    needed = _sublayer_vmem_needed(tm_eff, tn_eff, size, itemsize)
    vmem_limit = int(min(max(needed + (8 << 20), 32 << 20), _vmem_budget_bytes()))

    gamma2 = gamma.reshape(1, size).astype(jnp.float32)
    beta2 = beta.reshape(1, size).astype(jnp.float32)
    w_bf16 = w.astype(jnp.bfloat16)
    b2 = b.reshape(1, size).astype(jnp.float32)

    # Weight is re-streamed once per row tile only when column-tiled.
    weight_hbm = size * size * 2 * (1 if n_col == 1 else n_row)
    cost = pl.CostEstimate(
        flops=2 * N * size * size + 10 * N * size,
        transcendentals=2 * N,
        bytes_accessed=2 * N * size * itemsize + weight_hbm + 3 * size * 4)

    out = pl.pallas_call(
        _sublayer_connection_kernel,
        out_shape=jax.ShapeDtypeStruct((N, size), x.dtype),
        grid_spec=pltpu.PrefetchScalarGridSpec(
            num_scalar_prefetch=0,
            grid=(n_row, n_col),
            in_specs=[
                pl.BlockSpec((tm_eff, size), lambda i, j: (i, 0)),    # x rows, resident across j
                pl.BlockSpec((1, size), lambda i, j: (0, 0)),         # gamma (a_2)
                pl.BlockSpec((1, size), lambda i, j: (0, 0)),         # beta  (b_2)
                pl.BlockSpec((size, tn_eff), lambda i, j: (0, j)),    # bf16 weight (resident or col tile)
                pl.BlockSpec((1, tn_eff), lambda i, j: (0, j)),       # bias column tile
            ],
            out_specs=pl.BlockSpec((tm_eff, tn_eff), lambda i, j: (i, j)),
            scratch_shapes=[pltpu.VMEM((tm_eff, size), jnp.bfloat16)],  # cached LayerNorm
        ),
        compiler_params=pltpu.CompilerParams(
            # Only rows shard across v7x's 2 TCs; LN scratch carries state across j.
            dimension_semantics=("parallel", "arbitrary"),
            vmem_limit_bytes=vmem_limit,
        ),
        cost_estimate=cost,
    )(x2, gamma2, beta2, w_bf16, b2)
    return out.reshape(batch, seq, size)


def decoder_layer(x, memory, src_mask, tgt_mask, params, *, budget=None):
    """DecoderLayer.forward: three SublayerConnections (self-attn, src-attn, FFN).

    The attention / feed-forward sublayers are EXTERNAL modules injected into
    DecoderLayer; each is stood in by a Linear(size, size) so the fused
    residual + pre-LN + matmul hot path runs in the Pallas kernel.
    # TODO(synk): plug real multi-head self/src attention (using tgt_mask/src_mask
    # and `memory`) and the 2-layer FFN in place of the synthetic Linear sublayers.
    """
    del memory, src_mask, tgt_mask  # unused with the synthetic Linear sublayers
    batch, seq, size = x.shape
    N = batch * seq
    itemsize = x.dtype.itemsize
    if budget is None:
        budget = _vmem_budget_bytes()

    tm = min(256, _round_up(N, 8))
    while tm > 8 and _fused_vmem_needed(tm, size, itemsize) > budget:
        tm = max(_round_up(tm // 2, 8), 8)

    if len(params) == 3 and _fused_vmem_needed(tm, size, itemsize) <= budget:
        # All three bf16 weights fit in VMEM: one fused kernel -> activations make a
        # single HBM round trip instead of three (op is HBM-bound at small/moderate size).
        return _decoder_layer_fused(x, params, tm_eff=tm)

    # Large `size`: one pallas_call per SublayerConnection.
    for (gamma, beta, w, b) in params:
        x = sublayer_connection(x, gamma, beta, w, b, budget=budget)
    return x


def _reference(x, params):
    """Pure-JAX f32 reference mirroring the PyTorch module (eval mode)."""
    out = x.astype(jnp.float32)
    D = x.shape[-1]
    for (gamma, beta, w, b) in params:
        mean = jnp.mean(out, axis=-1, keepdims=True)
        var_unbiased = jnp.sum((out - mean) ** 2, axis=-1, keepdims=True) / (D - 1)
        std = jnp.sqrt(var_unbiased)
        normed = gamma * (out - mean) / (std + 1e-6) + beta
        out = out + (normed @ w + b)
    return out.astype(x.dtype)


if __name__ == "__main__":
    def make_inputs(key, batch, seq, size):
        keys = jax.random.split(key, 5)
        x = jax.random.normal(keys[0], (batch, seq, size), dtype=jnp.float32)
        memory = jax.random.normal(keys[1], (batch, seq, size), dtype=jnp.float32)
        src_mask = jnp.ones((batch, 1, seq), dtype=jnp.float32)
        tgt_mask = jnp.tril(jnp.ones((seq, seq), dtype=jnp.float32))[None]
        params = []
        for li in range(3):
            kw, kb = jax.random.split(keys[2 + li], 2)
            gamma = jnp.ones((size,), dtype=jnp.float32)     # a_2 init
            beta = jnp.zeros((size,), dtype=jnp.float32)     # b_2 init
            w = jax.random.normal(kw, (size, size), dtype=jnp.float32) * 0.05
            b = jax.random.normal(kb, (size,), dtype=jnp.float32) * 0.01
            params.append((gamma, beta, w, b))
        return x, memory, src_mask, tgt_mask, params

    key = jax.random.PRNGKey(0)
    k1, k2 = jax.random.split(key)

    # 1) Default path: small model dim -> fully fused decoder layer (one pallas_call).
    x, memory, src_mask, tgt_mask, params = make_inputs(k1, batch=2, seq=16, size=128)
    out = jax.block_until_ready(decoder_layer(x, memory, src_mask, tgt_mask, params))
    ref = _reference(x, params)
    assert out.shape == x.shape
    # bf16 MXU inputs + approx reciprocal -> loosened tolerance vs the pure-f32 reference
    assert jnp.allclose(out, ref, atol=5e-2, rtol=5e-2), "fused path mismatch"

    # 2) Force the per-sublayer path with the full weight resident (tiny fake budget).
    x2, memory2, src2, tgt2, params2 = make_inputs(k2, batch=2, seq=8, size=256)
    ref2 = _reference(x2, params2)
    out_res = jax.block_until_ready(
        decoder_layer(x2, memory2, src2, tgt2, params2, budget=500 * 1024))
    assert jnp.allclose(out_res, ref2, atol=5e-2, rtol=5e-2), "resident-weight path mismatch"

    # 3) Force the column-tiled per-sublayer path (LN scratch reused across column tiles).
    out_tiled = jax.block_until_ready(
        decoder_layer(x2, memory2, src2, tgt2, params2, budget=300 * 1024))
    assert jnp.allclose(out_tiled, ref2, atol=5e-2, rtol=5e-2), "column-tiled path mismatch"

    print("KERNEL_OK")
</pallas_src>

<mosaic_0001>
module attributes {stable_mosaic.version = 11 : i64} {
  func.func @_decoder_layer_fused_kernel(%arg0: i32, %arg1: memref<32x128xf32, #tpu.memory_space<vmem>>, %arg2: memref<1x128xf32, #tpu.memory_space<vmem>>, %arg3: memref<1x128xf32, #tpu.memory_space<vmem>>, %arg4: memref<128x128xbf16, #tpu.memory_space<vmem>>, %arg5: memref<1x128xf32, #tpu.memory_space<vmem>>, %arg6: memref<1x128xf32, #tpu.memory_space<vmem>>, %arg7: memref<1x128xf32, #tpu.memory_space<vmem>>, %arg8: memref<128x128xbf16, #tpu.memory_space<vmem>>, %arg9: memref<1x128xf32, #tpu.memory_space<vmem>>, %arg10: memref<1x128xf32, #tpu.memory_space<vmem>>, %arg11: memref<1x128xf32, #tpu.memory_space<vmem>>, %arg12: memref<128x128xbf16, #tpu.memory_space<vmem>>, %arg13: memref<1x128xf32, #tpu.memory_space<vmem>>, %arg14: memref<32x128xf32, #tpu.memory_space<vmem>>) attributes {dimension_semantics = [#tpu.dimension_semantics<parallel>], iteration_bounds = array<i64: 1>, scalar_prefetch = 0 : i64, scratch_operands = 0 : i64, tpu.core_type = #tpu.core_type<tc>, window_params = [{transform_indices = @transform_0, window_bounds = array<i64: 32, 128>}, {pipeline_mode = #tpu.pipeline_mode<synchronous>, transform_indices = @transform_1, window_bounds = array<i64: 1, 128>}, {pipeline_mode = #tpu.pipeline_mode<synchronous>, transform_indices = @transform_2, window_bounds = array<i64: 1, 128>}, {pipeline_mode = #tpu.pipeline_mode<synchronous>, transform_indices = @transform_3, window_bounds = array<i64: 128, 128>}, {pipeline_mode = #tpu.pipeline_mode<synchronous>, transform_indices = @transform_4, window_bounds = array<i64: 1, 128>}, {pipeline_mode = #tpu.pipeline_mode<synchronous>, transform_indices = @transform_5, window_bounds = array<i64: 1, 128>}, {pipeline_mode = #tpu.pipeline_mode<synchronous>, transform_indices = @transform_6, window_bounds = array<i64: 1, 128>}, {pipeline_mode = #tpu.pipeline_mode<synchronous>, transform_indices = @transform_7, window_bounds = array<i64: 128, 128>}, {pipeline_mode = #tpu.pipeline_mode<synchronous>, transform_indices = @transform_8, window_bounds = array<i64: 1, 128>}, {pipeline_mode = #tpu.pipeline_mode<synchronous>, transform_indices = @transform_9, window_bounds = array<i64: 1, 128>}, {pipeline_mode = #tpu.pipeline_mode<synchronous>, transform_indices = @transform_10, window_bounds = array<i64: 1, 128>}, {pipeline_mode = #tpu.pipeline_mode<synchronous>, transform_indices = @transform_11, window_bounds = array<i64: 128, 128>}, {pipeline_mode = #tpu.pipeline_mode<synchronous>, transform_indices = @transform_12, window_bounds = array<i64: 1, 128>}, {transform_indices = @transform_13, window_bounds = array<i64: 32, 128>}]} {
    %c0 = arith.constant 0 : index
    %c0_0 = arith.constant 0 : index
    %0 = vector.load %arg1[%c0, %c0_0] : memref<32x128xf32, #tpu.memory_space<vmem>>, vector<32x128xf32>
    %c0_1 = arith.constant 0 : index
    %c0_2 = arith.constant 0 : index
    %1 = vector.load %arg2[%c0_1, %c0_2] : memref<1x128xf32, #tpu.memory_space<vmem>>, vector<1x128xf32>
    %c0_3 = arith.constant 0 : index
    %c0_4 = arith.constant 0 : index
    %2 = vector.load %arg3[%c0_3, %c0_4] : memref<1x128xf32, #tpu.memory_space<vmem>>, vector<1x128xf32>
    %cst = arith.constant dense<0.000000e+00> : vector<32xf32>
    %3 = vector.multi_reduction <add>, %0, %cst [1] : vector<32x128xf32> to vector<32xf32>
    %4 = vector.shape_cast %3 : vector<32xf32> to vector<32x1xf32>
    %cst_5 = arith.constant 1.280000e+02 : f32
    %5 = vector.broadcast %cst_5 : f32 to vector<32x1xf32>
    %6 = arith.divf %4, %5 : vector<32x1xf32>
    %7 = vector.broadcast %6 : vector<32x1xf32> to vector<32x128xf32>
    %8 = arith.subf %0, %7 : vector<32x128xf32>
    %9 = arith.mulf %8, %8 : vector<32x128xf32>
    %cst_6 = arith.constant dense<0.000000e+00> : vector<32xf32>
    %10 = vector.multi_reduction <add>, %9, %cst_6 [1] : vector<32x128xf32> to vector<32xf32>
    %11 = vector.shape_cast %10 : vector<32xf32> to vector<32x1xf32>
    %cst_7 = arith.constant 0.00787401571 : f32
    %12 = vector.broadcast %cst_7 : f32 to vector<32x1xf32>
    %13 = arith.mulf %11, %12 : vector<32x1xf32>
    %14 = math.sqrt %13 : vector<32x1xf32>
    %cst_8 = arith.constant 9.99999997E-7 : f32
    %15 = vector.broadcast %cst_8 : f32 to vector<32x1xf32>
    %16 = arith.addf %14, %15 : vector<32x1xf32>
    %17 = tpu.reciprocal %16 {approx = true} : vector<32x1xf32> -> vector<32x1xf32>
    %18 = vector.broadcast %17 : vector<32x1xf32> to vector<32x128xf32>
    %19 = arith.mulf %8, %18 : vector<32x128xf32>
    %20 = vector.broadcast %1 : vector<1x128xf32> to vector<32x128xf32>
    %21 = arith.mulf %19, %20 : vector<32x128xf32>
    %22 = vector.broadcast %2 : vector<1x128xf32> to vector<32x128xf32>
    %23 = arith.addf %21, %22 : vector<32x128xf32>
    %24 = arith.truncf %23 : vector<32x128xf32> to vector<32x128xbf16>
    %c0_9 = arith.constant 0 : index
    %c0_10 = arith.constant 0 : index
    %25 = vector.load %arg4[%c0_9, %c0_10] : memref<128x128xbf16, #tpu.memory_space<vmem>>, vector<128x128xbf16>
    %cst_11 = arith.constant dense<0.000000e+00> : vector<32x128xf32>
    %26 = tpu.matmul %24, %25, %cst_11 {dimension_numbers = #tpu.dot_dimension_numbers<[1], [0], [0], [1], [0, 0, 1, 1], [], []>} : vector<32x128xbf16>, vector<128x128xbf16>, vector<32x128xf32> -> vector<32x128xf32>
    %27 = arith.addf %0, %26 : vector<32x128xf32>
    %c0_12 = arith.constant 0 : index
    %c0_13 = arith.constant 0 : index
    %28 = vector.load %arg5[%c0_12, %c0_13] : memref<1x128xf32, #tpu.memory_space<vmem>>, vector<1x128xf32>
    %29 = vector.broadcast %28 : vector<1x128xf32> to vector<32x128xf32>
    %30 = arith.addf %27, %29 : vector<32x128xf32>
    %c0_14 = arith.constant 0 : index
    %c0_15 = arith.constant 0 : index
    %31 = vector.load %arg6[%c0_14, %c0_15] : memref<1x128xf32, #tpu.memory_space<vmem>>, vector<1x128xf32>
    %c0_16 = arith.constant 0 : index
    %c0_17 = arith.constant 0 : index
    %32 = vector.load %arg7[%c0_16, %c0_17] : memref<1x128xf32, #tpu.memory_space<vmem>>, vector<1x128xf32>
    %cst_18 = arith.constant dense<0.000000e+00> : vector<32xf32>
    %33 = vector.multi_reduction <add>, %30, %cst_18 [1] : vector<32x128xf32> to vector<32xf32>
    %34 = vector.shape_cast %33 : vector<32xf32> to vector<32x1xf32>
    %cst_19 = arith.constant 1.280000e+02 : f32
    %35 = vector.broadcast %cst_19 : f32 to vector<32x1xf32>
    %36 = arith.divf %34, %35 : vector<32x1xf32>
    %37 = vector.broadcast %36 : vector<32x1xf32> to vector<32x128xf32>
    %38 = arith.subf %30, %37 : vector<32x128xf32>
    %39 = arith.mulf %38, %38 : vector<32x128xf32>
    %cst_20 = arith.constant dense<0.000000e+00> : vector<32xf32>
    %40 = vector.multi_reduction <add>, %39, %cst_20 [1] : vector<32x128xf32> to vector<32xf32>
    %41 = vector.shape_cast %40 : vector<32xf32> to vector<32x1xf32>
    %cst_21 = arith.constant 0.00787401571 : f32
    %42 = vector.broadcast %cst_21 : f32 to vector<32x1xf32>
    %43 = arith.mulf %41, %42 : vector<32x1xf32>
    %44 = math.sqrt %43 : vector<32x1xf32>
    %cst_22 = arith.constant 9.99999997E-7 : f32
    %45 = vector.broadcast %cst_22 : f32 to vector<32x1xf32>
    %46 = arith.addf %44, %45 : vector<32x1xf32>
    %47 = tpu.reciprocal %46 {approx = true} : vector<32x1xf32> -> vector<32x1xf32>
    %48 = vector.broadcast %47 : vector<32x1xf32> to vector<32x128xf32>
    %49 = arith.mulf %38, %48 : vector<32x128xf32>
    %50 = vector.broadcast %31 : vector<1x128xf32> to vector<32x128xf32>
    %51 = arith.mulf %49, %50 : vector<32x128xf32>
    %52 = vector.broadcast %32 : vector<1x128xf32> to vector<32x128xf32>
    %53 = arith.addf %51, %52 : vector<32x128xf32>
    %54 = arith.truncf %53 : vector<32x128xf32> to vector<32x128xbf16>
    %c0_23 = arith.constant 0 : index
    %c0_24 = arith.constant 0 : index
    %55 = vector.load %arg8[%c0_23, %c0_24] : memref<128x128xbf16, #tpu.memory_space<vmem>>, vector<128x128xbf16>
    %cst_25 = arith.constant dense<0.000000e+00> : vector<32x128xf32>
    %56 = tpu.matmul %54, %55, %cst_25 {dimension_numbers = #tpu.dot_dimension_numbers<[1], [0], [0], [1], [0, 0, 1, 1], [], []>} : vector<32x128xbf16>, vector<128x128xbf16>, vector<32x128xf32> -> vector<32x128xf32>
    %57 = arith.addf %30, %56 : vector<32x128xf32>
    %c0_26 = arith.constant 0 : index
    %c0_27 = arith.constant 0 : index
    %58 = vector.load %arg9[%c0_26, %c0_27] : memref<1x128xf32, #tpu.memory_space<vmem>>, vector<1x128xf32>
    %59 = vector.broadcast %58 : vector<1x128xf32> to vector<32x128xf32>
    %60 = arith.addf %57, %59 : vector<32x128xf32>
    %c0_28 = arith.constant 0 : index
    %c0_29 = arith.constant 0 : index
    %61 = vector.load %arg10[%c0_28, %c0_29] : memref<1x128xf32, #tpu.memory_space<vmem>>, vector<1x128xf32>
    %c0_30 = arith.constant 0 : index
    %c0_31 = arith.constant 0 : index
    %62 = vector.load %arg11[%c0_30, %c0_31] : memref<1x128xf32, #tpu.memory_space<vmem>>, vector<1x128xf32>
    %cst_32 = arith.constant dense<0.000000e+00> : vector<32xf32>
    %63 = vector.multi_reduction <add>, %60, %cst_32 [1] : vector<32x128xf32> to vector<32xf32>
    %64 = vector.shape_cast %63 : vector<32xf32> to vector<32x1xf32>
    %cst_33 = arith.constant 1.280000e+02 : f32
    %65 = vector.broadcast %cst_33 : f32 to vector<32x1xf32>
    %66 = arith.divf %64, %65 : vector<32x1xf32>
    %67 = vector.broadcast %66 : vector<32x1xf32> to vector<32x128xf32>
    %68 = arith.subf %60, %67 : vector<32x128xf32>
    %69 = arith.mulf %68, %68 : vector<32x128xf32>
    %cst_34 = arith.constant dense<0.000000e+00> : vector<32xf32>
    %70 = vector.multi_reduction <add>, %69, %cst_34 [1] : vector<32x128xf32> to vector<32xf32>
    %71 = vector.shape_cast %70 : vector<32xf32> to vector<32x1xf32>
    %cst_35 = arith.constant 0.00787401571 : f32
    %72 = vector.broadcast %cst_35 : f32 to vector<32x1xf32>
    %73 = arith.mulf %71, %72 : vector<32x1xf32>
    %74 = math.sqrt %73 : vector<32x1xf32>
    %cst_36 = arith.constant 9.99999997E-7 : f32
    %75 = vector.broadcast %cst_36 : f32 to vector<32x1xf32>
    %76 = arith.addf %74, %75 : vector<32x1xf32>
    %77 = tpu.reciprocal %76 {approx = true} : vector<32x1xf32> -> vector<32x1xf32>
    %78 = vector.broadcast %77 : vector<32x1xf32> to vector<32x128xf32>
    %79 = arith.mulf %68, %78 : vector<32x128xf32>
    %80 = vector.broadcast %61 : vector<1x128xf32> to vector<32x128xf32>
    %81 = arith.mulf %79, %80 : vector<32x128xf32>
    %82 = vector.broadcast %62 : vector<1x128xf32> to vector<32x128xf32>
    %83 = arith.addf %81, %82 : vector<32x128xf32>
    %84 = arith.truncf %83 : vector<32x128xf32> to vector<32x128xbf16>
    %c0_37 = arith.constant 0 : index
    %c0_38 = arith.constant 0 : index
    %85 = vector.load %arg12[%c0_37, %c0_38] : memref<128x128xbf16, #tpu.memory_space<vmem>>, vector<128x128xbf16>
    %cst_39 = arith.constant dense<0.000000e+00> : vector<32x128xf32>
    %86 = tpu.matmul %84, %85, %cst_39 {dimension_numbers = #tpu.dot_dimension_numbers<[1], [0], [0], [1], [0, 0, 1, 1], [], []>} : vector<32x128xbf16>, vector<128x128xbf16>, vector<32x128xf32> -> vector<32x128xf32>
    %87 = arith.addf %60, %86 : vector<32x128xf32>
    %c0_40 = arith.constant 0 : index
    %c0_41 = arith.constant 0 : index
    %88 = vector.load %arg13[%c0_40, %c0_41] : memref<1x128xf32, #tpu.memory_space<vmem>>, vector<1x128xf32>
    %89 = vector.broadcast %88 : vector<1x128xf32> to vector<32x128xf32>
    %90 = arith.addf %87, %89 : vector<32x128xf32>
    %c0_42 = arith.constant 0 : index
    %c0_43 = arith.constant 0 : index
    %91 = vector.load %arg14[%c0_42, %c0_43] : memref<32x128xf32, #tpu.memory_space<vmem>>, vector<32x128xf32>
    tpu.vector_store %arg14[%c0_42, %c0_43], %90 {strides = array<i32>} : memref<32x128xf32, #tpu.memory_space<vmem>>, vector<32x128xf32>,
    return
  }
  func.func @transform_0(%arg0: i32) -> (i32, i32) {
    %c0_i32 = arith.constant 0 : i32
    %c0_i32_0 = arith.constant 0 : i32
    return %arg0, %c0_i32 : i32, i32
  }
  func.func @transform_1(%arg0: i32) -> (i32, i32) {
    %c0_i32 = arith.constant 0 : i32
    %c0_i32_0 = arith.constant 0 : i32
    %c0_i32_1 = arith.constant 0 : i32
    return %c0_i32, %c0_i32_0 : i32, i32
  }
  func.func @transform_2(%arg0: i32) -> (i32, i32) {
    %c0_i32 = arith.constant 0 : i32
    %c0_i32_0 = arith.constant 0 : i32
    %c0_i32_1 = arith.constant 0 : i32
    return %c0_i32, %c0_i32_0 : i32, i32
  }
  func.func @transform_3(%arg0: i32) -> (i32, i32) {
    %c0_i32 = arith.constant 0 : i32
    %c0_i32_0 = arith.constant 0 : i32
    %c0_i32_1 = arith.constant 0 : i32
    return %c0_i32, %c0_i32_0 : i32, i32
  }
  func.func @transform_4(%arg0: i32) -> (i32, i32) {
    %c0_i32 = arith.constant 0 : i32
    %c0_i32_0 = arith.constant 0 : i32
    %c0_i32_1 = arith.constant 0 : i32
    return %c0_i32, %c0_i32_0 : i32, i32
  }
  func.func @transform_5(%arg0: i32) -> (i32, i32) {
    %c0_i32 = arith.constant 0 : i32
    %c0_i32_0 = arith.constant 0 : i32
    %c0_i32_1 = arith.constant 0 : i32
    return %c0_i32, %c0_i32_0 : i32, i32
  }
  func.func @transform_6(%arg0: i32) -> (i32, i32) {
    %c0_i32 = arith.constant 0 : i32
    %c0_i32_0 = arith.constant 0 : i32
    %c0_i32_1 = arith.constant 0 : i32
    return %c0_i32, %c0_i32_0 : i32, i32
  }
  func.func @transform_7(%arg0: i32) -> (i32, i32) {
    %c0_i32 = arith.constant 0 : i32
    %c0_i32_0 = arith.constant 0 : i32
    %c0_i32_1 = arith.constant 0 : i32
    return %c0_i32, %c0_i32_0 : i32, i32
  }
  func.func @transform_8(%arg0: i32) -> (i32, i32) {
    %c0_i32 = arith.constant 0 : i32
    %c0_i32_0 = arith.constant 0 : i32
    %c0_i32_1 = arith.constant 0 : i32
    return %c0_i32, %c0_i32_0 : i32, i32
  }
  func.func @transform_9(%arg0: i32) -> (i32, i32) {
    %c0_i32 = arith.constant 0 : i32
    %c0_i32_0 = arith.constant 0 : i32
    %c0_i32_1 = arith.constant 0 : i32
    return %c0_i32, %c0_i32_0 : i32, i32
  }
  func.func @transform_10(%arg0: i32) -> (i32, i32) {
    %c0_i32 = arith.constant 0 : i32
    %c0_i32_0 = arith.constant 0 : i32
    %c0_i32_1 = arith.constant 0 : i32
    return %c0_i32, %c0_i32_0 : i32, i32
  }
  func.func @transform_11(%arg0: i32) -> (i32, i32) {
    %c0_i32 = arith.constant 0 : i32
    %c0_i32_0 = arith.constant 0 : i32
    %c0_i32_1 = arith.constant 0 : i32
    return %c0_i32, %c0_i32_0 : i32, i32
  }
  func.func @transform_12(%arg0: i32) -> (i32, i32) {
    %c0_i32 = arith.constant 0 : i32
    %c0_i32_0 = arith.constant 0 : i32
    %c0_i32_1 = arith.constant 0 : i32
    return %c0_i32, %c0_i32_0 : i32, i32
  }
  func.func @transform_13(%arg0: i32) -> (i32, i32) {
    %c0_i32 = arith.constant 0 : i32
    %c0_i32_0 = arith.constant 0 : i32
    return %arg0, %c0_i32 : i32, i32
  }
}

</mosaic_0001>

<llo_original>
// kernel: tpu_custom_call.1
$region0: #{tpu_custom_call.1}
  #allocation0 [shape = 'u32[]', space=smem, size = 0x4, offset = 0x4, fixed_abs, tag = 'smem constant byte address 0x4 - core index']
  #allocation1 [shape = 'u32[144,128]{1,0:T(1,128)}', space=vmem, size = 0x12000, scoped, tag = 'internal scratch']
  %s0 = inlined_call_operand.hbm [shape: f32[32,128], index: 0, kind: input, shape index: {}]
  %s1 = inlined_call_operand.vmem [shape: f32[1,128], index: 1, kind: input, shape index: {}]
  %s2 = inlined_call_operand.vmem [shape: f32[1,128], index: 2, kind: input, shape index: {}]
  %s3 = inlined_call_operand.hbm [shape: bf16[128,128], index: 3, kind: input, shape index: {}]
  %s4 = inlined_call_operand.vmem [shape: f32[1,128], index: 4, kind: input, shape index: {}]
  %s5 = inlined_call_operand.vmem [shape: f32[1,128], index: 5, kind: input, shape index: {}]
  %s6 = inlined_call_operand.vmem [shape: f32[1,128], index: 6, kind: input, shape index: {}]
  %s7 = inlined_call_operand.hbm [shape: bf16[128,128], index: 7, kind: input, shape index: {}]
  %s8 = inlined_call_operand.vmem [shape: f32[1,128], index: 8, kind: input, shape index: {}]
  %s9 = inlined_call_operand.vmem [shape: f32[1,128], index: 9, kind: input, shape index: {}]
  %s10 = inlined_call_operand.vmem [shape: f32[1,128], index: 10, kind: input, shape index: {}]
  %s11 = inlined_call_operand.hbm [shape: bf16[128,128], index: 11, kind: input, shape index: {}]
  %s12 = inlined_call_operand.vmem [shape: f32[1,128], index: 12, kind: input, shape index: {}]
  %s13 = inlined_call_operand.hbm [shape: f32[32,128], index: 13, kind: output, shape index: {}]
  %s14 = sld [smem:[#allocation0]]
  $region78: #{tpu_custom_call.1} parent=0
    _
  %s16 = ssub.s32 1, %s14
  %s17 = scalar_select 0, %s16, %s14
  $region1: #{tpu_custom_call.1} parent=0
    #allocation2 [shape = 'u8[16384]{0}', space=vmem, size = 0x4000, scoped, tag = 'input window, operand 0, single buffered']
    #allocation3 [shape = 's32[1]{0}', space=sflag, size = 0x4, scoped, tag = 'scoped memory for tpu_custom_call.1']
    #allocation4 [shape = 's32[1]{0}', space=sflag, size = 0x4, scoped, tag = 'scoped memory for tpu_custom_call.1']
    #allocation5 [shape = 'u8[32768]{0}', space=vmem, size = 0x8000, scoped, tag = 'input window, operand 3, single buffered']
    #allocation6 [shape = 's32[1]{0}', space=sflag, size = 0x4, scoped, tag = 'scoped memory for tpu_custom_call.1']
    #allocation7 [shape = 'u8[32768]{0}', space=vmem, size = 0x8000, scoped, tag = 'input window, operand 7, single buffered']
    #allocation8 [shape = 'u8[32768]{0}', space=vmem, size = 0x8000, scoped, tag = 'input window, operand 11, single buffered']
    #allocation9 [shape = 's32[1]{0}', space=sflag, size = 0x4, scoped, tag = 'scoped memory for tpu_custom_call.1']
    #allocation10 [shape = 'u8[16384]{0}', space=vmem, size = 0x4000, scoped, tag = 'output window, operand 0, single buffered']
    %18 = vsyncpa [#allocation3], 0
    %19 = vsyncpa [#allocation6], 0
    %20 = vsyncpa [#allocation9], 0
    %21 = vsyncpa [#allocation4], 0
    // Predicated region
    $region2: #{tpu_custom_call.1} parent=1 // pred_check
      _
    $region3: #{tpu_custom_call.1} parent=1 // pred_check_branch
      %23 = sbr.rel (0) target = $region5
    $region4: #{tpu_custom_call.1} parent=1 // pred_region
      %s25 = ssub.s32 512, 512
      %26 = vsyncadd [#allocation3], %s25
      %s27 = sshll.u32 [#allocation2], 4
      %s28 = int_to_ptr.vmem [resolvable:$true] %s27
      %33 = dma.hbm_to_vmem [thread:$0]  %s0, 512, %s28, [#allocation3], 128, 128, 8
    $region5: #{tpu_custom_call.1} parent=1 // pred_fallthru
      _
    // Predicated region
    $region6: #{tpu_custom_call.1} parent=1 // pred_check
      _
    $region7: #{tpu_custom_call.1} parent=1 // pred_check_branch
      %35 = sbr.rel (0) target = $region9
    $region8: #{tpu_custom_call.1} parent=1 // pred_region
      _
    $region9: #{tpu_custom_call.1} parent=1 // pred_fallthru
      _
    // Predicated region
    $region10: #{tpu_custom_call.1} parent=1 // pred_check
      _
    $region11: #{tpu_custom_call.1} parent=1 // pred_check_branch
      %37 = sbr.rel (0) target = $region13
    $region12: #{tpu_custom_call.1} parent=1 // pred_region
      _
    $region13: #{tpu_custom_call.1} parent=1 // pred_fallthru
      _
    // Predicated region
    $region14: #{tpu_custom_call.1} parent=1 // pred_check
      _
    $region15: #{tpu_custom_call.1} parent=1 // pred_check_branch
      %39 = sbr.rel (0) target = $region17
    $region16: #{tpu_custom_call.1} parent=1 // pred_region
      %s41 = ssub.s32 1024, 1024
      %42 = vsyncadd [#allocation6], %s41
      %s43 = sshll.u32 [#allocation5], 4
      %s44 = int_to_ptr.vmem [resolvable:$true] %s43
      %49 = dma.hbm_to_vmem [thread:$0]  %s3, 1024, %s44, [#allocation6], 64, 64, 4
    $region17: #{tpu_custom_call.1} parent=1 // pred_fallthru
      _
    // Predicated region
    $region18: #{tpu_custom_call.1} parent=1 // pred_check
      _
    $region19: #{tpu_custom_call.1} parent=1 // pred_check_branch
      %51 = sbr.rel (0) target = $region21
    $region20: #{tpu_custom_call.1} parent=1 // pred_region
      _
    $region21: #{tpu_custom_call.1} parent=1 // pred_fallthru
      _
    // Predicated region
    $region22: #{tpu_custom_call.1} parent=1 // pred_check
      _
    $region23: #{tpu_custom_call.1} parent=1 // pred_check_branch
      %53 = sbr.rel (0) target = $region25
    $region24: #{tpu_custom_call.1} parent=1 // pred_region
      _
    $region25: #{tpu_custom_call.1} parent=1 // pred_fallthru
      _
    // Predicated region
    $region26: #{tpu_custom_call.1} parent=1 // pred_check
      _
    $region27: #{tpu_custom_call.1} parent=1 // pred_check_branch
      %55 = sbr.rel (0) target = $region29
    $region28: #{tpu_custom_call.1} parent=1 // pred_region
      _
    $region29: #{tpu_custom_call.1} parent=1 // pred_fallthru
      _
    // Predicated region
    $region30: #{tpu_custom_call.1} parent=1 // pred_check
      _
    $region31: #{tpu_custom_call.1} parent=1 // pred_check_branch
      %57 = sbr.rel (0) target = $region33
    $region32: #{tpu_custom_call.1} parent=1 // pred_region
      %s59 = ssub.s32 1024, 1024
      %60 = vsyncadd [#allocation6], %s59
      %s61 = sshll.u32 [#allocation7], 4
      %s62 = int_to_ptr.vmem [resolvable:$true] %s61
      %67 = dma.hbm_to_vmem [thread:$0]  %s7, 1024, %s62, [#allocation6], 64, 64, 4
    $region33: #{tpu_custom_call.1} parent=1 // pred_fallthru
      _
    // Predicated region
    $region34: #{tpu_custom_call.1} parent=1 // pred_check
      _
    $region35: #{tpu_custom_call.1} parent=1 // pred_check_branch
      %69 = sbr.rel (0) target = $region37
    $region36: #{tpu_custom_call.1} parent=1 // pred_region
      _
    $region37: #{tpu_custom_call.1} parent=1 // pred_fallthru
      _
    // Predicated region
    $region38: #{tpu_custom_call.1} parent=1 // pred_check
      _
    $region39: #{tpu_custom_call.1} parent=1 // pred_check_branch
      %71 = sbr.rel (0) target = $region41
    $region40: #{tpu_custom_call.1} parent=1 // pred_region
      _
    $region41: #{tpu_custom_call.1} parent=1 // pred_fallthru
      _
    // Predicated region
    $region42: #{tpu_custom_call.1} parent=1 // pred_check
      _
    $region43: #{tpu_custom_call.1} parent=1 // pred_check_branch
      %73 = sbr.rel (0) target = $region45
    $region44: #{tpu_custom_call.1} parent=1 // pred_region
      _
    $region45: #{tpu_custom_call.1} parent=1 // pred_fallthru
      _
    // Predicated region
    $region46: #{tpu_custom_call.1} parent=1 // pred_check
      _
    $region47: #{tpu_custom_call.1} parent=1 // pred_check_branch
      %75 = sbr.rel (0) target = $region49
    $region48: #{tpu_custom_call.1} parent=1 // pred_region
      %s77 = ssub.s32 1024, 1024
      %78 = vsyncadd [#allocation9], %s77
      %s79 = sshll.u32 [#allocation8], 4
      %s80 = int_to_ptr.vmem [resolvable:$true] %s79
      %85 = dma.hbm_to_vmem [thread:$0]  %s11, 1024, %s80, [#allocation9], 64, 64, 4
    $region49: #{tpu_custom_call.1} parent=1 // pred_fallthru
      _
    // Predicated region
    $region50: #{tpu_custom_call.1} parent=1 // pred_check
      _
    $region51: #{tpu_custom_call.1} parent=1 // pred_check_branch
      %87 = sbr.rel (0) target = $region53
    $region52: #{tpu_custom_call.1} parent=1 // pred_region
      _
    $region53: #{tpu_custom_call.1} parent=1 // pred_fallthru
      _
    // Predicated region
    $region54: #{tpu_custom_call.1} parent=1 // pred_check
      _
    $region55: #{tpu_custom_call.1} parent=1 // pred_check_branch
      %89 = sbr.rel (0) target = $region57
    $region56: #{tpu_custom_call.1} parent=1 // pred_region
      %90 = dma.done [#allocation3], 512
    $region57: #{tpu_custom_call.1} parent=1 // pred_fallthru
      _
    // Predicated region
    $region58: #{tpu_custom_call.1} parent=1 // pred_check
      _
    $region59: #{tpu_custom_call.1} parent=1 // pred_check_branch
      %92 = sbr.rel (0) target = $region61
    $region60: #{tpu_custom_call.1} parent=1 // pred_region
      %93 = dma.done [#allocation6], 1024
    $region61: #{tpu_custom_call.1} parent=1 // pred_fallthru
      _
    // Predicated region
    $region62: #{tpu_custom_call.1} parent=1 // pred_check
      _
    $region63: #{tpu_custom_call.1} parent=1 // pred_check_branch
      %95 = sbr.rel (0) target = $region65
    $region64: #{tpu_custom_call.1} parent=1 // pred_region
      %96 = dma.done [#allocation6], 1024
    $region65: #{tpu_custom_call.1} parent=1 // pred_fallthru
      _
    // Predicated region
    $region66: #{tpu_custom_call.1} parent=1 // pred_check
      _
    $region67: #{tpu_custom_call.1} parent=1 // pred_check_branch
      %98 = sbr.rel (0) target = $region69
    $region68: #{tpu_custom_call.1} parent=1 // pred_region
      %99 = dma.done [#allocation9], 1024
    $region69: #{tpu_custom_call.1} parent=1 // pred_fallthru
      _
    %v101 = vld [vmem:[#allocation2] sm:$0xff]
    %v102 = vld [vmem:[#allocation2 + $0x8] sm:$0xff]
    %v103 = vld [vmem:[#allocation2 + $0x10] sm:$0xff]
    %v104 = vld [vmem:[#allocation2 + $0x18] sm:$0xff]
    %v105 = vld [vmem:[%s1] sm:$0x1]
    %v106 = vld [vmem:[%s2] sm:$0x1]
    %107 = vadd.xlane.f32.xlu0 %v101
    %v108 = vpop.xlane.xlu0 %107
    %109 = vadd.xlane.f32.xlu0 %v102
    %v110 = vpop.xlane.xlu0 %109
    %111 = vadd.xlane.f32.xlu0 %v103
    %v112 = vpop.xlane.xlu0 %111
    %113 = vadd.xlane.f32.xlu0 %v104
    %v114 = vpop.xlane.xlu0 %113
    %v115 = vrcp.pop 128.0
    %v116 = vmul.f32 %v108, %v115
    %v117 = vmul.f32 %v110, %v115
    %v118 = vmul.f32 %v112, %v115
    %v119 = vmul.f32 %v114, %v115
    %v120 = vsub.f32 %v101, %v116
    %v121 = vsub.f32 %v102, %v117
    %v122 = vsub.f32 %v103, %v118
    %v123 = vsub.f32 %v104, %v119
    %v124 = vmul.f32 %v120, %v120
    %v125 = vmul.f32 %v121, %v121
    %v126 = vmul.f32 %v122, %v122
    %v127 = vmul.f32 %v123, %v123
    %128 = vadd.xlane.f32.xlu0 %v124
    %v129 = vpop.xlane.xlu0 %128
    %130 = vadd.xlane.f32.xlu0 %v125
    %v131 = vpop.xlane.xlu0 %130
    %132 = vadd.xlane.f32.xlu0 %v126
    %v133 = vpop.xlane.xlu0 %132
    %134 = vadd.xlane.f32.xlu0 %v127
    %v135 = vpop.xlane.xlu0 %134
    %v136 = vmul.f32 %v129, 0.007874016
    %v137 = vmul.f32 %v131, 0.007874016
    %v138 = vmul.f32 %v133, 0.007874016
    %v139 = vmul.f32 %v135, 0.007874016
    %v140 = vrsqrt.pop %v136
    %v141 = vmul.f32 %v136, %v140
    %vm142 = vcmp.eq.f32.partialorder %v136, inf
    %v143 = vsel %vm142, %v136, %v141
    %vm144 = vcmp.eq.f32.partialorder %v136, 0.0
    %v145 = vand.u32 %v136, 2147483648
    %v146 = vsel %vm144, %v145, %v143
    %v147 = vrsqrt.pop %v137
    %v148 = vmul.f32 %v137, %v147
    %vm149 = vcmp.eq.f32.partialorder %v137, inf
    %v150 = vsel %vm149, %v137, %v148
    %vm151 = vcmp.eq.f32.partialorder %v137, 0.0
    %v152 = vand.u32 %v137, 2147483648
    %v153 = vsel %vm151, %v152, %v150
    %v154 = vrsqrt.pop %v138
    %v155 = vmul.f32 %v138, %v154
    %vm156 = vcmp.eq.f32.partialorder %v138, inf
    %v157 = vsel %vm156, %v138, %v155
    %vm158 = vcmp.eq.f32.partialorder %v138, 0.0
    %v159 = vand.u32 %v138, 2147483648
    %v160 = vsel %vm158, %v159, %v157
    %v161 = vrsqrt.pop %v139
    %v162 = vmul.f32 %v139, %v161
    %vm163 = vcmp.eq.f32.partialorder %v139, inf
    %v164 = vsel %vm163, %v139, %v162
    %vm165 = vcmp.eq.f32.partialorder %v139, 0.0
    %v166 = vand.u32 %v139, 2147483648
    %v167 = vsel %vm165, %v166, %v164
    %v168 = vadd.f32 %v146, 1e-06
    %v169 = vadd.f32 %v153, 1e-06
    %v170 = vadd.f32 %v160, 1e-06
    %v171 = vadd.f32 %v167, 1e-06
    %v172 = vrcp.pop %v168
    %v173 = vrcp.pop %v169
    %v174 = vrcp.pop %v170
    %v175 = vrcp.pop %v171
    %v176 = vmul.f32 %v120, %v172
    %v177 = vmul.f32 %v121, %v173
    %v178 = vmul.f32 %v122, %v174
    %v179 = vmul.f32 %v123, %v175
    %v181 = vlaneseq
    %v182 = vshrl.u32 %v181, 7
    %v183 = vsub.s32 0, %v182
    %v184 = vrot.slane %v105, %v183
    %v186 = vmul.f32 %v176, %v184
    %v187 = vmul.f32 %v177, %v184
    %v188 = vmul.f32 %v178, %v184
    %v189 = vmul.f32 %v179, %v184
    %v191 = vlaneseq
    %v192 = vshrl.u32 %v191, 7
    %v193 = vsub.s32 0, %v192
    %v194 = vrot.slane %v106, %v193
    %v196 = vadd.f32 %v186, %v194
    %v197 = vadd.f32 %v187, %v194
    %v198 = vadd.f32 %v188, %v194
    %v199 = vadd.f32 %v189, %v194
    %v200 = vpack.c.bf16 %v197, %v196
    %v201 = vpack.c.bf16 %v199, %v198
    %v202 = vld [vmem:[#allocation5] sm:$0xf]
    %v203 = vld [vmem:[#allocation5 + $0x4] sm:$0xf]
    %v204 = vld [vmem:[#allocation5 + $0x8] sm:$0xf]
    %v205 = vld [vmem:[#allocation5 + $0xc] sm:$0xf]
    %v206 = vld [vmem:[#allocation5 + $0x10] sm:$0xf]
    %v207 = vld [vmem:[#allocation5 + $0x14] sm:$0xf]
    %v208 = vld [vmem:[#allocation5 + $0x18] sm:$0xf]
    %v209 = vld [vmem:[#allocation5 + $0x1c] sm:$0xf]
    %v210 = vld [vmem:[#allocation5 + $0x20] sm:$0xf]
    %v211 = vld [vmem:[#allocation5 + $0x24] sm:$0xf]
    %v212 = vld [vmem:[#allocation5 + $0x28] sm:$0xf]
    %v213 = vld [vmem:[#allocation5 + $0x2c] sm:$0xf]
    %v214 = vld [vmem:[#allocation5 + $0x30] sm:$0xf]
    %v215 = vld [vmem:[#allocation5 + $0x34] sm:$0xf]
    %v216 = vld [vmem:[#allocation5 + $0x38] sm:$0xf]
    %v217 = vld [vmem:[#allocation5 + $0x3c] sm:$0xf]
    %v234 = vunpack.c.l.b16 %v202
    %v235 = vunpack.c.l.b16 %v203
    %v236 = vunpack.c.l.b16 %v204
    %v237 = vunpack.c.l.b16 %v205
    %v238 = vunpack.c.l.b16 %v206
    %v239 = vunpack.c.l.b16 %v207
    %v240 = vunpack.c.l.b16 %v208
    %v241 = vunpack.c.l.b16 %v209
    %v242 = vunpack.c.l.b16 %v210
    %v243 = vunpack.c.l.b16 %v211
    %v244 = vunpack.c.l.b16 %v212
    %v245 = vunpack.c.l.b16 %v213
    %v246 = vunpack.c.l.b16 %v214
    %v247 = vunpack.c.l.b16 %v215
    %v248 = vunpack.c.l.b16 %v216
    %v249 = vunpack.c.l.b16 %v217
    %v250 = vpack.c.b16 %v235, %v234
    %v251 = vpack.c.b16 %v237, %v236
    %v252 = vpack.c.b16 %v239, %v238
    %v253 = vpack.c.b16 %v241, %v240
    %v254 = vpack.c.b16 %v243, %v242
    %v255 = vpack.c.b16 %v245, %v244
    %v256 = vpack.c.b16 %v247, %v246
    %v257 = vpack.c.b16 %v249, %v248
    %266 = vmatprep.subr.bf16.mxu0 0
    %267 = vmatpush1.bf16.msra.mxu0 %v250
    %268 = vmatprep.subr.bf16.mxu0 0
    %269 = vmatpush1.bf16.msra.mxu0 %v251
    %270 = vmatprep.subr.bf16.mxu0 0
    %271 = vmatpush1.bf16.msra.mxu0 %v252
    %272 = vmatprep.subr.bf16.mxu0 0
    %273 = vmatpush1.bf16.msra.mxu0 %v253
    %274 = vmatprep.subr.bf16.mxu0 0
    %275 = vmatpush1.bf16.msra.mxu0 %v254
    %276 = vmatprep.subr.bf16.mxu0 0
    %277 = vmatpush1.bf16.msra.mxu0 %v255
    %278 = vmatprep.subr.bf16.mxu0 0
    %279 = vmatpush1.bf16.msra.mxu0 %v256
    %280 = vmatprep.subr.bf16.mxu0 0
    %281 = vmatpush1.bf16.msra.mxu0 %v257
    %282 = vmatprep.subr.bf16.mxu0 0
    %283 = vmatpush1.bf16.msra.mxu0 0
    %284 = vmatprep.subr.bf16.mxu0 0
    %285 = vmatpush1.bf16.msra.mxu0 0
    %286 = vmatprep.subr.bf16.mxu0 0
    %287 = vmatpush1.bf16.msra.mxu0 0
    %288 = vmatprep.subr.bf16.mxu0 0
    %289 = vmatpush1.bf16.msra.mxu0 0
    %290 = vmatprep.subr.bf16.mxu0 0
    %291 = vmatpush1.bf16.msra.mxu0 0
    %292 = vmatprep.subr.bf16.mxu0 0
    %293 = vmatpush1.bf16.msra.mxu0 0
    %294 = vmatprep.subr.bf16.mxu0 0
    %295 = vmatpush1.bf16.msra.mxu0 0
    %296 = vmatprep.subr.bf16.mxu0 0
    %297 = vmatpush1.bf16.msra.mxu0 0
    %298 = vmatprep.mubr.bf16.mxu0 0
    %299 = vmatmul.mubr.bf16.gmra.mrb[0].mxu0 %v200
    %v300 = vpop.f32.mrb[0].mxu0
    %v301 = vadd.f32 0.0, %v300
    %v302 = vpop.f32.mrb[0].mxu0
    %v303 = vpop.f32.mrb[0].mxu0
    %v304 = vadd.f32 0.0, %v303
    %v305 = vpop.f32.mrb[0].mxu0
    %306 = vmatprep.mubr.bf16.mxu0 0
    %307 = vmatmul.mubr.bf16.gmra.mrb[0].mxu0 %v201
    %v308 = vpop.f32.mrb[0].mxu0
    %v309 = vadd.f32 0.0, %v308
    %v310 = vpop.f32.mrb[0].mxu0
    %v311 = vpop.f32.mrb[0].mxu0
    %v312 = vadd.f32 0.0, %v311
    %v313 = vpop.f32.mrb[0].mxu0
    %314 = vdwg.mxu0
    %v315 = vadd.f32 %v101, %v301
    %v316 = vadd.f32 %v102, %v304
    %v317 = vadd.f32 %v103, %v309
    %v318 = vadd.f32 %v104, %v312
    %v319 = vld [vmem:[%s4] sm:$0x1]
    %v321 = vlaneseq
    %v322 = vshrl.u32 %v321, 7
    %v323 = vsub.s32 0, %v322
    %v324 = vrot.slane %v319, %v323
    %v326 = vadd.f32 %v315, %v324
    %v327 = vadd.f32 %v316, %v324
    %v328 = vadd.f32 %v317, %v324
    %v329 = vadd.f32 %v318, %v324
    %v330 = vld [vmem:[%s5] sm:$0x1]
    %v331 = vld [vmem:[%s6] sm:$0x1]
    %332 = vadd.xlane.f32.xlu0 %v326
    %v333 = vpop.xlane.xlu0 %332
    %334 = vadd.xlane.f32.xlu0 %v327
    %v335 = vpop.xlane.xlu0 %334
    %336 = vadd.xlane.f32.xlu0 %v328
    %v337 = vpop.xlane.xlu0 %336
    %338 = vadd.xlane.f32.xlu0 %v329
    %v339 = vpop.xlane.xlu0 %338
    %v340 = vmul.f32 %v333, %v115
    %v341 = vmul.f32 %v335, %v115
    %v342 = vmul.f32 %v337, %v115
    %v343 = vmul.f32 %v339, %v115
    %v344 = vsub.f32 %v326, %v340
    %v345 = vsub.f32 %v327, %v341
    %v346 = vsub.f32 %v328, %v342
    %v347 = vsub.f32 %v329, %v343
    %v348 = vmul.f32 %v344, %v344
    %v349 = vmul.f32 %v345, %v345
    %v350 = vmul.f32 %v346, %v346
    %v351 = vmul.f32 %v347, %v347
    %352 = vadd.xlane.f32.xlu0 %v348
    %v353 = vpop.xlane.xlu0 %352
    %354 = vadd.xlane.f32.xlu0 %v349
    %v355 = vpop.xlane.xlu0 %354
    %356 = vadd.xlane.f32.xlu0 %v350
    %v357 = vpop.xlane.xlu0 %356
    %358 = vadd.xlane.f32.xlu0 %v351
    %v359 = vpop.xlane.xlu0 %358
    %v360 = vmul.f32 %v353, 0.007874016
    %v361 = vmul.f32 %v355, 0.007874016
    %v362 = vmul.f32 %v357, 0.007874016
    %v363 = vmul.f32 %v359, 0.007874016
    %v364 = vrsqrt.pop %v360
    %v365 = vmul.f32 %v360, %v364
    %vm366 = vcmp.eq.f32.partialorder %v360, inf
    %v367 = vsel %vm366, %v360, %v365
    %vm368 = vcmp.eq.f32.partialorder %v360, 0.0
    %v369 = vand.u32 %v360, 2147483648
    %v370 = vsel %vm368, %v369, %v367
    %v371 = vrsqrt.pop %v361
    %v372 = vmul.f32 %v361, %v371
    %vm373 = vcmp.eq.f32.partialorder %v361, inf
    %v374 = vsel %vm373, %v361, %v372
    %vm375 = vcmp.eq.f32.partialorder %v361, 0.0
    %v376 = vand.u32 %v361, 2147483648
    %v377 = vsel %vm375, %v376, %v374
    %v378 = vrsqrt.pop %v362
    %v379 = vmul.f32 %v362, %v378
    %vm380 = vcmp.eq.f32.partialorder %v362, inf
    %v381 = vsel %vm380, %v362, %v379
    %vm382 = vcmp.eq.f32.partialorder %v362, 0.0
    %v383 = vand.u32 %v362, 2147483648
    %v384 = vsel %vm382, %v383, %v381
    %v385 = vrsqrt.pop %v363
    %v386 = vmul.f32 %v363, %v385
    %vm387 = vcmp.eq.f32.partialorder %v363, inf
    %v388 = vsel %vm387, %v363, %v386
    %vm389 = vcmp.eq.f32.partialorder %v363, 0.0
    %v390 = vand.u32 %v363, 2147483648
    %v391 = vsel %vm389, %v390, %v388
    %v392 = vadd.f32 %v370, 1e-06
    %v393 = vadd.f32 %v377, 1e-06
    %v394 = vadd.f32 %v384, 1e-06
    %v395 = vadd.f32 %v391, 1e-06
    %v396 = vrcp.pop %v392
    %v397 = vrcp.pop %v393
    %v398 = vrcp.pop %v394
    %v399 = vrcp.pop %v395
    %v400 = vmul.f32 %v344, %v396
    %v401 = vmul.f32 %v345, %v397
    %v402 = vmul.f32 %v346, %v398
    %v403 = vmul.f32 %v347, %v399
    %v405 = vlaneseq
    %v406 = vshrl.u32 %v405, 7
    %v407 = vsub.s32 0, %v406
    %v408 = vrot.slane %v330, %v407
    %v410 = vmul.f32 %v400, %v408
    %v411 = vmul.f32 %v401, %v408
    %v412 = vmul.f32 %v402, %v408
    %v413 = vmul.f32 %v403, %v408
    %v415 = vlaneseq
    %v416 = vshrl.u32 %v415, 7
    %v417 = vsub.s32 0, %v416
    %v418 = vrot.slane %v331, %v417
    %v420 = vadd.f32 %v410, %v418
    %v421 = vadd.f32 %v411, %v418
    %v422 = vadd.f32 %v412, %v418
    %v423 = vadd.f32 %v413, %v418
    %v424 = vpack.c.bf16 %v421, %v420
    %v425 = vpack.c.bf16 %v423, %v422
    %v426 = vld [vmem:[#allocation7] sm:$0xf]
    %v427 = vld [vmem:[#allocation7 + $0x4] sm:$0xf]
    %v428 = vld [vmem:[#allocation7 + $0x8] sm:$0xf]
    %v429 = vld [vmem:[#allocation7 + $0xc] sm:$0xf]
    %v430 = vld [vmem:[#allocation7 + $0x10] sm:$0xf]
    %v431 = vld [vmem:[#allocation7 + $0x14] sm:$0xf]
    %v432 = vld [vmem:[#allocation7 + $0x18] sm:$0xf]
    %v433 = vld [vmem:[#allocation7 + $0x1c] sm:$0xf]
    %v434 = vld [vmem:[#allocation7 + $0x20] sm:$0xf]
    %v435 = vld [vmem:[#allocation7 + $0x24] sm:$0xf]
    %v436 = vld [vmem:[#allocation7 + $0x28] sm:$0xf]
    %v437 = vld [vmem:[#allocation7 + $0x2c] sm:$0xf]
    %v438 = vld [vmem:[#allocation7 + $0x30] sm:$0xf]
    %v439 = vld [vmem:[#allocation7 + $0x34] sm:$0xf]
    %v440 = vld [vmem:[#allocation7 + $0x38] sm:$0xf]
    %v441 = vld [vmem:[#allocation7 + $0x3c] sm:$0xf]
    %v458 = vunpack.c.l.b16 %v426
    %v459 = vunpack.c.l.b16 %v427
    %v460 = vunpack.c.l.b16 %v428
    %v461 = vunpack.c.l.b16 %v429
    %v462 = vunpack.c.l.b16 %v430
    %v463 = vunpack.c.l.b16 %v431
    %v464 = vunpack.c.l.b16 %v432
    %v465 = vunpack.c.l.b16 %v433
    %v466 = vunpack.c.l.b16 %v434
    %v467 = vunpack.c.l.b16 %v435
    %v468 = vunpack.c.l.b16 %v436
    %v469 = vunpack.c.l.b16 %v437
    %v470 = vunpack.c.l.b16 %v438
    %v471 = vunpack.c.l.b16 %v439
    %v472 = vunpack.c.l.b16 %v440
    %v473 = vunpack.c.l.b16 %v441
    %v474 = vpack.c.b16 %v459, %v458
    %v475 = vpack.c.b16 %v461, %v460
    %v476 = vpack.c.b16 %v463, %v462
    %v477 = vpack.c.b16 %v465, %v464
    %v478 = vpack.c.b16 %v467, %v466
    %v479 = vpack.c.b16 %v469, %v468
    %v480 = vpack.c.b16 %v471, %v470
    %v481 = vpack.c.b16 %v473, %v472
    %490 = vmatprep.subr.bf16.mxu0 0
    %491 = vmatpush1.bf16.msra.mxu0 %v474
    %492 = vmatprep.subr.bf16.mxu0 0
    %493 = vmatpush1.bf16.msra.mxu0 %v475
    %494 = vmatprep.subr.bf16.mxu0 0
    %495 = vmatpush1.bf16.msra.mxu0 %v476
    %496 = vmatprep.subr.bf16.mxu0 0
    %497 = vmatpush1.bf16.msra.mxu0 %v477
    %498 = vmatprep.subr.bf16.mxu0 0
    %499 = vmatpush1.bf16.msra.mxu0 %v478
    %500 = vmatprep.subr.bf16.mxu0 0
    %501 = vmatpush1.bf16.msra.mxu0 %v479
    %502 = vmatprep.subr.bf16.mxu0 0
    %503 = vmatpush1.bf16.msra.mxu0 %v480
    %504 = vmatprep.subr.bf16.mxu0 0
    %505 = vmatpush1.bf16.msra.mxu0 %v481
    %506 = vmatprep.subr.bf16.mxu0 0
    %507 = vmatpush1.bf16.msra.mxu0 0
    %508 = vmatprep.subr.bf16.mxu0 0
    %509 = vmatpush1.bf16.msra.mxu0 0
    %510 = vmatprep.subr.bf16.mxu0 0
    %511 = vmatpush1.bf16.msra.mxu0 0
    %512 = vmatprep.subr.bf16.mxu0 0
    %513 = vmatpush1.bf16.msra.mxu0 0
    %514 = vmatprep.subr.bf16.mxu0 0
    %515 = vmatpush1.bf16.msra.mxu0 0
    %516 = vmatprep.subr.bf16.mxu0 0
    %517 = vmatpush1.bf16.msra.mxu0 0
    %518 = vmatprep.subr.bf16.mxu0 0
    %519 = vmatpush1.bf16.msra.mxu0 0
    %520 = vmatprep.subr.bf16.mxu0 0
    %521 = vmatpush1.bf16.msra.mxu0 0
    %522 = vmatprep.mubr.bf16.mxu0 0
    %523 = vmatmul.mubr.bf16.gmra.mrb[0].mxu0 %v424
    %v524 = vpop.f32.mrb[0].mxu0
    %v525 = vadd.f32 0.0, %v524
    %v526 = vpop.f32.mrb[0].mxu0
    %v527 = vpop.f32.mrb[0].mxu0
    %v528 = vadd.f32 0.0, %v527
    %v529 = vpop.f32.mrb[0].mxu0
    %530 = vmatprep.mubr.bf16.mxu0 0
    %531 = vmatmul.mubr.bf16.gmra.mrb[0].mxu0 %v425
    %v532 = vpop.f32.mrb[0].mxu0
    %v533 = vadd.f32 0.0, %v532
    %v534 = vpop.f32.mrb[0].mxu0
    %v535 = vpop.f32.mrb[0].mxu0
    %v536 = vadd.f32 0.0, %v535
    %v537 = vpop.f32.mrb[0].mxu0
    %538 = vdwg.mxu0
    %v539 = vadd.f32 %v326, %v525
    %v540 = vadd.f32 %v327, %v528
    %v541 = vadd.f32 %v328, %v533
    %v542 = vadd.f32 %v329, %v536
    %v543 = vld [vmem:[%s8] sm:$0x1]
    %v545 = vlaneseq
    %v546 = vshrl.u32 %v545, 7
    %v547 = vsub.s32 0, %v546
    %v548 = vrot.slane %v543, %v547
    %v550 = vadd.f32 %v539, %v548
    %v551 = vadd.f32 %v540, %v548
    %v552 = vadd.f32 %v541, %v548
    %v553 = vadd.f32 %v542, %v548
    %v554 = vld [vmem:[%s9] sm:$0x1]
    %v555 = vld [vmem:[%s10] sm:$0x1]
    %556 = vadd.xlane.f32.xlu0 %v550
    %v557 = vpop.xlane.xlu0 %556
    %558 = vadd.xlane.f32.xlu0 %v551
    %v559 = vpop.xlane.xlu0 %558
    %560 = vadd.xlane.f32.xlu0 %v552
    %v561 = vpop.xlane.xlu0 %560
    %562 = vadd.xlane.f32.xlu0 %v553
    %v563 = vpop.xlane.xlu0 %562
    %v564 = vmul.f32 %v557, %v115
    %v565 = vmul.f32 %v559, %v115
    %v566 = vmul.f32 %v561, %v115
    %v567 = vmul.f32 %v563, %v115
    %v568 = vsub.f32 %v550, %v564
    %v569 = vsub.f32 %v551, %v565
    %v570 = vsub.f32 %v552, %v566
    %v571 = vsub.f32 %v553, %v567
    %v572 = vmul.f32 %v568, %v568
    %v573 = vmul.f32 %v569, %v569
    %v574 = vmul.f32 %v570, %v570
    %v575 = vmul.f32 %v571, %v571
    %576 = vadd.xlane.f32.xlu0 %v572
    %v577 = vpop.xlane.xlu0 %576
    %578 = vadd.xlane.f32.xlu0 %v573
    %v579 = vpop.xlane.xlu0 %578
    %580 = vadd.xlane.f32.xlu0 %v574
    %v581 = vpop.xlane.xlu0 %580
    %582 = vadd.xlane.f32.xlu0 %v575
    %v583 = vpop.xlane.xlu0 %582
    %v584 = vmul.f32 %v577, 0.007874016
    %v585 = vmul.f32 %v579, 0.007874016
    %v586 = vmul.f32 %v581, 0.007874016
    %v587 = vmul.f32 %v583, 0.007874016
    %v588 = vrsqrt.pop %v584
    %v589 = vmul.f32 %v584, %v588
    %vm590 = vcmp.eq.f32.partialorder %v584, inf
    %v591 = vsel %vm590, %v584, %v589
    %vm592 = vcmp.eq.f32.partialorder %v584, 0.0
    %v593 = vand.u32 %v584, 2147483648
    %v594 = vsel %vm592, %v593, %v591
    %v595 = vrsqrt.pop %v585
    %v596 = vmul.f32 %v585, %v595
    %vm597 = vcmp.eq.f32.partialorder %v585, inf
    %v598 = vsel %vm597, %v585, %v596
    %vm599 = vcmp.eq.f32.partialorder %v585, 0.0
    %v600 = vand.u32 %v585, 2147483648
    %v601 = vsel %vm599, %v600, %v598
    %v602 = vrsqrt.pop %v586
    %v603 = vmul.f32 %v586, %v602
    %vm604 = vcmp.eq.f32.partialorder %v586, inf
    %v605 = vsel %vm604, %v586, %v603
    %vm606 = vcmp.eq.f32.partialorder %v586, 0.0
    %v607 = vand.u32 %v586, 2147483648
    %v608 = vsel %vm606, %v607, %v605
    %v609 = vrsqrt.pop %v587
    %v610 = vmul.f32 %v587, %v609
    %vm611 = vcmp.eq.f32.partialorder %v587, inf
    %v612 = vsel %vm611, %v587, %v610
    %vm613 = vcmp.eq.f32.partialorder %v587, 0.0
    %v614 = vand.u32 %v587, 2147483648
    %v615 = vsel %vm613, %v614, %v612
    %v616 = vadd.f32 %v594, 1e-06
    %v617 = vadd.f32 %v601, 1e-06
    %v618 = vadd.f32 %v608, 1e-06
    %v619 = vadd.f32 %v615, 1e-06
    %v620 = vrcp.pop %v616
    %v621 = vrcp.pop %v617
    %v622 = vrcp.pop %v618
    %v623 = vrcp.pop %v619
    %v624 = vmul.f32 %v568, %v620
    %v625 = vmul.f32 %v569, %v621
    %v626 = vmul.f32 %v570, %v622
    %v627 = vmul.f32 %v571, %v623
    %v629 = vlaneseq
    %v630 = vshrl.u32 %v629, 7
    %v631 = vsub.s32 0, %v630
    %v632 = vrot.slane %v554, %v631
    %v634 = vmul.f32 %v624, %v632
    %v635 = vmul.f32 %v625, %v632
    %v636 = vmul.f32 %v626, %v632
    %v637 = vmul.f32 %v627, %v632
    %v639 = vlaneseq
    %v640 = vshrl.u32 %v639, 7
    %v641 = vsub.s32 0, %v640
    %v642 = vrot.slane %v555, %v641
    %v644 = vadd.f32 %v634, %v642
    %v645 = vadd.f32 %v635, %v642
    %v646 = vadd.f32 %v636, %v642
    %v647 = vadd.f32 %v637, %v642
    %v648 = vpack.c.bf16 %v645, %v644
    %v649 = vpack.c.bf16 %v647, %v646
    %v650 = vld [vmem:[#allocation8] sm:$0xf]
    %v651 = vld [vmem:[#allocation8 + $0x4] sm:$0xf]
    %v652 = vld [vmem:[#allocation8 + $0x8] sm:$0xf]
    %v653 = vld [vmem:[#allocation8 + $0xc] sm:$0xf]
    %v654 = vld [vmem:[#allocation8 + $0x10] sm:$0xf]
    %v655 = vld [vmem:[#allocation8 + $0x14] sm:$0xf]
    %v656 = vld [vmem:[#allocation8 + $0x18] sm:$0xf]
    %v657 = vld [vmem:[#allocation8 + $0x1c] sm:$0xf]
    %v658 = vld [vmem:[#allocation8 + $0x20] sm:$0xf]
    %v659 = vld [vmem:[#allocation8 + $0x24] sm:$0xf]
    %v660 = vld [vmem:[#allocation8 + $0x28] sm:$0xf]
    %v661 = vld [vmem:[#allocation8 + $0x2c] sm:$0xf]
    %v662 = vld [vmem:[#allocation8 + $0x30] sm:$0xf]
    %v663 = vld [vmem:[#allocation8 + $0x34] sm:$0xf]
    %v664 = vld [vmem:[#allocation8 + $0x38] sm:$0xf]
    %v665 = vld [vmem:[#allocation8 + $0x3c] sm:$0xf]
    %v682 = vunpack.c.l.b16 %v650
    %v683 = vunpack.c.l.b16 %v651
    %v684 = vunpack.c.l.b16 %v652
    %v685 = vunpack.c.l.b16 %v653
    %v686 = vunpack.c.l.b16 %v654
    %v687 = vunpack.c.l.b16 %v655
    %v688 = vunpack.c.l.b16 %v656
    %v689 = vunpack.c.l.b16 %v657
    %v690 = vunpack.c.l.b16 %v658
    %v691 = vunpack.c.l.b16 %v659
    %v692 = vunpack.c.l.b16 %v660
    %v693 = vunpack.c.l.b16 %v661
    %v694 = vunpack.c.l.b16 %v662
    %v695 = vunpack.c.l.b16 %v663
    %v696 = vunpack.c.l.b16 %v664
    %v697 = vunpack.c.l.b16 %v665
    %v698 = vpack.c.b16 %v683, %v682
    %v699 = vpack.c.b16 %v685, %v684
    %v700 = vpack.c.b16 %v687, %v686
    %v701 = vpack.c.b16 %v689, %v688
    %v702 = vpack.c.b16 %v691, %v690
    %v703 = vpack.c.b16 %v693, %v692
    %v704 = vpack.c.b16 %v695, %v694
    %v705 = vpack.c.b16 %v697, %v696
    %714 = vmatprep.subr.bf16.mxu0 0
    %715 = vmatpush1.bf16.msra.mxu0 %v698
    %716 = vmatprep.subr.bf16.mxu0 0
    %717 = vmatpush1.bf16.msra.mxu0 %v699
    %718 = vmatprep.subr.bf16.mxu0 0
    %719 = vmatpush1.bf16.msra.mxu0 %v700
    %720 = vmatprep.subr.bf16.mxu0 0
    %721 = vmatpush1.bf16.msra.mxu0 %v701
    %722 = vmatprep.subr.bf16.mxu0 0
    %723 = vmatpush1.bf16.msra.mxu0 %v702
    %724 = vmatprep.subr.bf16.mxu0 0
    %725 = vmatpush1.bf16.msra.mxu0 %v703
    %726 = vmatprep.subr.bf16.mxu0 0
    %727 = vmatpush1.bf16.msra.mxu0 %v704
    %728 = vmatprep.subr.bf16.mxu0 0
    %729 = vmatpush1.bf16.msra.mxu0 %v705
    %730 = vmatprep.subr.bf16.mxu0 0
    %731 = vmatpush1.bf16.msra.mxu0 0
    %732 = vmatprep.subr.bf16.mxu0 0
    %733 = vmatpush1.bf16.msra.mxu0 0
    %734 = vmatprep.subr.bf16.mxu0 0
    %735 = vmatpush1.bf16.msra.mxu0 0
    %736 = vmatprep.subr.bf16.mxu0 0
    %737 = vmatpush1.bf16.msra.mxu0 0
    %738 = vmatprep.subr.bf16.mxu0 0
    %739 = vmatpush1.bf16.msra.mxu0 0
    %740 = vmatprep.subr.bf16.mxu0 0
    %741 = vmatpush1.bf16.msra.mxu0 0
    %742 = vmatprep.subr.bf16.mxu0 0
    %743 = vmatpush1.bf16.msra.mxu0 0
    %744 = vmatprep.subr.bf16.mxu0 0
    %745 = vmatpush1.bf16.msra.mxu0 0
    %746 = vmatprep.mubr.bf16.mxu0 0
    %747 = vmatmul.mubr.bf16.gmra.mrb[0].mxu0 %v648
    %v748 = vpop.f32.mrb[0].mxu0
    %v749 = vadd.f32 0.0, %v748
    %v750 = vpop.f32.mrb[0].mxu0
    %v751 = vpop.f32.mrb[0].mxu0
    %v752 = vadd.f32 0.0, %v751
    %v753 = vpop.f32.mrb[0].mxu0
    %754 = vmatprep.mubr.bf16.mxu0 0
    %755 = vmatmul.mubr.bf16.gmra.mrb[0].mxu0 %v649
    %v756 = vpop.f32.mrb[0].mxu0
    %v757 = vadd.f32 0.0, %v756
    %v758 = vpop.f32.mrb[0].mxu0
    %v759 = vpop.f32.mrb[0].mxu0
    %v760 = vadd.f32 0.0, %v759
    %v761 = vpop.f32.mrb[0].mxu0
    %762 = vdwg.mxu0
    %v763 = vadd.f32 %v550, %v749
    %v764 = vadd.f32 %v551, %v752
    %v765 = vadd.f32 %v552, %v757
    %v766 = vadd.f32 %v553, %v760
    %v767 = vld [vmem:[%s12] sm:$0x1]
    %v769 = vlaneseq
    %v770 = vshrl.u32 %v769, 7
    %v771 = vsub.s32 0, %v770
    %v772 = vrot.slane %v767, %v771
    %v774 = vadd.f32 %v763, %v772
    %v775 = vadd.f32 %v764, %v772
    %v776 = vadd.f32 %v765, %v772
    %v777 = vadd.f32 %v766, %v772
    %778 = vst [vmem:[#allocation10] sm:$0xff] %v774
    %779 = vst [vmem:[#allocation10 + $0x8] sm:$0xff] %v775
    %780 = vst [vmem:[#allocation10 + $0x10] sm:$0xff] %v776
    %781 = vst [vmem:[#allocation10 + $0x18] sm:$0xff] %v777
    // Predicated region
    $region70: #{tpu_custom_call.1} parent=1 // pred_check
      _
    $region71: #{tpu_custom_call.1} parent=1 // pred_check_branch
      %783 = sbr.rel (0) target = $region73
    $region72: #{tpu_custom_call.1} parent=1 // pred_region
      %s785 = ssub.s32 512, 512
      %786 = vsyncadd [#allocation4], %s785
      %s787 = sshll.u32 [#allocation10], 4
      %s788 = int_to_ptr.vmem [resolvable:$true] %s787
      %793 = dma.vmem_to_hbm [thread:$0]  %s788, 512, %s13, [#allocation4], 128, 128, 8
    $region73: #{tpu_custom_call.1} parent=1 // pred_fallthru
      _
    // Predicated region
    $region74: #{tpu_custom_call.1} parent=1 // pred_check
      _
    $region75: #{tpu_custom_call.1} parent=1 // pred_check_branch
      %795 = sbr.rel (0) target = $region77
    $region76: #{tpu_custom_call.1} parent=1 // pred_region
      %796 = dma.done [#allocation4], 512
    $region77: #{tpu_custom_call.1} parent=1 // pred_fallthru
      _
    %797 = vsyncpa [#allocation3], 1
    %798 = vsyncpa [#allocation6], 1
    %799 = vsyncpa [#allocation9], 1
    %800 = vsyncpa [#allocation4], 1

</llo_original>
